<compile_context>
chip_gen: v6e
topology: v6e:2x2x1
jax: 0.10.0
libtpu: 0.0.40
codegen_flags: <defaults>
</compile_context>

<pallas_src>
import jax
import jax.numpy as jnp
from jax import lax
from jax.experimental import pallas as pl
from jax.experimental.pallas import tpu as pltpu

LANES = 128
SUBLANES = 8


def _ceil_div(a, b):
    return -(-a // b)


def _vmem_budget():
    """(per-input block budget bytes, scoped vmem_limit_bytes) per TPU generation."""
    try:
        kind = jax.devices()[0].device_kind.lower()
    except Exception:
        kind = ""
    if "v5" in kind:
        return 2 << 20, 64 << 20   # v5e: 128 MiB physical; raise the 16 MiB scoped default
    if "v6" in kind:
        return 3 << 20, 96 << 20   # v6e: bigger tiles push streaming toward HBM roofline
    if "v7" in kind:
        return 3 << 20, 48 << 20   # v7x: only 64 MiB VMEM per TC -> cap resident footprint
    return 2 << 20, 48 << 20       # unknown: conservative, safe on all generations


def _pick_row_tile(k_rows, per_input_budget):
    """Sublane-aligned row tile over the lane-dense axis.

    Multiple of 8, sized to the per-input VMEM budget, and balanced across
    tiles so zero-padding waste is < 8 rows.
    """
    bytes_per_row = LANES * 4  # f32
    max_rows = max(SUBLANES,
                   (per_input_budget // bytes_per_row) // SUBLANES * SUBLANES)
    n_tiles = _ceil_div(k_rows, max_rows)
    tr = _ceil_div(_ceil_div(k_rows, n_tiles), SUBLANES) * SUBLANES
    return tr


# ----------------------------------------------------------------------------
# Fused kernel: grid = (B, row_tiles).
#  * Four lane-dense feature streams tiled (1, tr, 128); per-lane/sublane
#    partial sums of squared differences accumulated in VMEM scratch (VALU only
#    in the hot loop).
#  * M block (1, N, N) resident across the row-tile axis (constant index_map);
#    its two Frobenius losses computed once at the last tile.
#  * Output: lane-dense (1, 1, 128) slab per batch:
#      lane 0 = ||fe1_ng - fe2_f||_F,  lane 1 = ||fe2_ng - fe1_f||_F,
#      lane 2 = ||M M^T - I||_F,       lane 3 = ||M||_F.
# ----------------------------------------------------------------------------
def fused_loss_kernel(f1_ref, f2_ref, f3_ref, f4_ref, m_ref, o_ref,
                      acc1_ref, acc2_ref):
    t = pl.program_id(1)

    @pl.when(t == 0)
    def _():
        acc1_ref[...] = jnp.zeros_like(acc1_ref)
        acc2_ref[...] = jnp.zeros_like(acc2_ref)

    d1 = f1_ref[0] - f2_ref[0]                       # (tr, 128) f32
    d2 = f3_ref[0] - f4_ref[0]
    sq1 = d1 * d1
    sq2 = d2 * d2
    # Leading-axis reduce of (tr//8, 8, 128) = plain vreg adds (no cross-lane work).
    acc1_ref[...] += jnp.sum(sq1.reshape(-1, SUBLANES, LANES), axis=0)
    acc2_ref[...] += jnp.sum(sq2.reshape(-1, SUBLANES, LANES), axis=0)

    @pl.when(t == pl.num_programs(1) - 1)
    def _():
        # Single cross-lane reduction + sqrt per batch element.
        fro1 = jnp.sqrt(jnp.sum(acc1_ref[...]))
        fro2 = jnp.sqrt(jnp.sum(acc2_ref[...]))

        # M losses (M block is resident; computed once per batch element).
        m = m_ref[0].astype(jnp.float32)             # (N, N)
        n = m.shape[0]
        mmt = lax.dot_general(m, m, (((1,), (1,)), ((), ())),  # M @ M^T on MXU
                              preferred_element_type=jnp.float32)
        sum_m2 = jnp.sum(m * m)                      # == trace(M M^T)
        sum_mmt2 = jnp.sum(mmt * mmt)
        # ||MM^T - I||_F^2 = sum(mmt^2) - 2*trace(mmt) + N  (no materialized eye)
        mloss1 = jnp.sqrt(jnp.maximum(sum_mmt2 - 2.0 * sum_m2 + jnp.float32(n), 0.0))
        mloss2 = jnp.sqrt(sum_m2)

        lane = lax.broadcasted_iota(jnp.int32, o_ref.shape, 2)
        o_ref[...] = jnp.where(lane == 0, fro1,
                     jnp.where(lane == 1, fro2,
                     jnp.where(lane == 2, mloss1,
                     jnp.where(lane == 3, mloss2, 0.0))))


# ----------------------------------------------------------------------------
# Forward wrapper.
# ----------------------------------------------------------------------------
def contrastive_loss_forward(fe1_nograd, fe2_nograd, fe1_final, fe2_final, M,
                             *, alpha1, alpha2):
    assert fe1_nograd.shape == fe2_nograd.shape == fe1_final.shape == fe2_final.shape
    B = fe1_final.shape[0]
    N = M.shape[2]
    # torch code implicitly requires square M (MM^T compared against eye(M.shape[2]))
    assert M.shape[1] == N, "M must be square per the reference module"

    feat_elems = 1
    for s in fe1_final.shape[1:]:
        feat_elems *= s

    per_input_budget, vmem_limit = _vmem_budget()
    k_rows = _ceil_div(feat_elems, LANES)
    tr = _pick_row_tile(k_rows, per_input_budget)
    T = _ceil_div(k_rows, tr)
    k_pad = T * tr

    def lane_dense(x):
        # (B, ...) -> (B, k_pad, 128) f32, zero-padded. Zeros contribute 0 to
        # the sum of squared differences (both operands padded identically).
        flat = x.reshape(B, -1).astype(jnp.float32)
        pad = k_pad * LANES - flat.shape[1]
        if pad:
            flat = jnp.pad(flat, ((0, 0), (0, pad)))
        return flat.reshape(B, k_pad, LANES)

    f1 = lane_dense(fe1_nograd)
    f2 = lane_dense(fe2_final)
    f3 = lane_dense(fe2_nograd)
    f4 = lane_dense(fe1_final)
    Mf = M.astype(jnp.float32)

    fe_spec = pl.BlockSpec((1, tr, LANES), lambda b, t: (b, t, 0))
    # Constant block index along t => M stays resident (one DMA per batch elem).
    m_spec = pl.BlockSpec((1, N, N), lambda b, t: (b, 0, 0))
    out_spec = pl.BlockSpec((1, 1, LANES), lambda b, t: (b, 0, 0))

    out = pl.pallas_call(
        fused_loss_kernel,
        grid=(B, T),
        in_specs=[fe_spec, fe_spec, fe_spec, fe_spec, m_spec],
        out_specs=out_spec,
        out_shape=jax.ShapeDtypeStruct((B, 1, LANES), jnp.float32),
        scratch_shapes=[pltpu.VMEM((SUBLANES, LANES), jnp.float32),
                        pltpu.VMEM((SUBLANES, LANES), jnp.float32)],
        compiler_params=pltpu.CompilerParams(
            dimension_semantics=("parallel", "arbitrary"),
            vmem_limit_bytes=vmem_limit),
    )(f1, f2, f3, f4, Mf)

    # Tiny scalar epilogue (means over B, alpha-weighted combine) in plain JAX.
    bmean_F1 = jnp.mean(out[:, 0, 0])
    bmean_F2 = jnp.mean(out[:, 0, 1])
    M_loss1 = jnp.mean(out[:, 0, 2])
    M_loss2 = jnp.mean(out[:, 0, 3])
    FB_loss = (bmean_F1 + bmean_F2) / 2.0
    final_loss = FB_loss + alpha1 * M_loss1 + alpha2 * M_loss2
    return final_loss, FB_loss, M_loss1, M_loss2


# ----------------------------------------------------------------------------
# Pure-JAX reference (mirrors the torch module) for correctness checking.
# ----------------------------------------------------------------------------
def _reference(fe1_ng, fe2_ng, fe1_f, fe2_f, M, alpha1, alpha2):
    def bfro(a, b):
        return jnp.sqrt(jnp.sum((a - b) ** 2, axis=(1, 2)))
    bmean1 = jnp.mean(bfro(fe1_ng, fe2_f))
    bmean2 = jnp.mean(bfro(fe2_ng, fe1_f))
    eye = jnp.eye(M.shape[2], dtype=jnp.float32)[None]
    mmt = jnp.einsum("bij,bkj->bik", M, M)
    M1 = jnp.mean(jnp.sqrt(jnp.sum((mmt - eye) ** 2, axis=(1, 2))))
    M2 = jnp.mean(jnp.sqrt(jnp.sum(M ** 2, axis=(1, 2))))
    FB = (bmean1 + bmean2) / 2.0
    return FB + alpha1 * M1 + alpha2 * M2, FB, M1, M2


if __name__ == "__main__":
    key = jax.random.PRNGKey(0)
    k1, k2, k3, k4, k5 = jax.random.split(key, 5)
    B, R, C, N = 2, 16, 32, 8          # small shapes consistent with the module
    ALPHA1, ALPHA2 = 0.5, 0.1          # args.alpha1 / args.alpha2

    fe1_nograd = jax.random.normal(k1, (B, R, C), jnp.float32)
    fe2_nograd = jax.random.normal(k2, (B, R, C), jnp.float32)
    fe1_final = jax.random.normal(k3, (B, R, C), jnp.float32)
    fe2_final = jax.random.normal(k4, (B, R, C), jnp.float32)
    M = jax.random.normal(k5, (B, N, N), jnp.float32)

    out = contrastive_loss_forward(fe1_nograd, fe2_nograd, fe1_final, fe2_final, M,
                                   alpha1=ALPHA1, alpha2=ALPHA2)
    out = jax.block_until_ready(out)

    ref = _reference(fe1_nograd, fe2_nograd, fe1_final, fe2_final, M, ALPHA1, ALPHA2)
    names = ("final_loss", "FB_loss", "M_loss1", "M_loss2")
    for name, a, b in zip(names, out, ref):
        assert jnp.isfinite(a), (name, a)
        assert jnp.allclose(a, b, rtol=1e-4, atol=1e-4), (name, a, b)
    print("KERNEL_OK")
</pallas_src>

<mosaic_0001>
module attributes {stable_mosaic.version = 11 : i64} {
  func.func @fused_loss_kernel(%arg0: i32, %arg1: i32, %arg2: memref<1x8x128xf32, #tpu.memory_space<vmem>>, %arg3: memref<1x8x128xf32, #tpu.memory_space<vmem>>, %arg4: memref<1x8x128xf32, #tpu.memory_space<vmem>>, %arg5: memref<1x8x128xf32, #tpu.memory_space<vmem>>, %arg6: memref<1x8x8xf32, #tpu.memory_space<vmem>>, %arg7: memref<1x1x128xf32, #tpu.memory_space<vmem>>, %arg8: memref<8x128xf32, #tpu.memory_space<vmem>>, %arg9: memref<8x128xf32, #tpu.memory_space<vmem>>) attributes {dimension_semantics = [#tpu.dimension_semantics<parallel>, #tpu.dimension_semantics<arbitrary>], iteration_bounds = array<i64: 2, 1>, scalar_prefetch = 0 : i64, scratch_operands = 2 : i64, tpu.core_type = #tpu.core_type<tc>, window_params = [{transform_indices = @transform_0, window_bounds = array<i64: 1, 8, 128>}, {transform_indices = @transform_1, window_bounds = array<i64: 1, 8, 128>}, {transform_indices = @transform_2, window_bounds = array<i64: 1, 8, 128>}, {transform_indices = @transform_3, window_bounds = array<i64: 1, 8, 128>}, {transform_indices = @transform_4, window_bounds = array<i64: 1, 8, 8>}, {transform_indices = @transform_5, window_bounds = array<i64: 1, 1, 128>}]} {
    %c0_i32 = arith.constant 0 : i32
    %0 = arith.cmpi eq, %arg1, %c0_i32 : i32
    %1 = arith.extui %0 : i1 to i32
    %c0_i32_0 = arith.constant 0 : i32
    %2 = arith.cmpi ne, %1, %c0_i32_0 : i32
    scf.if %2 {
      %cst_23 = arith.constant 0.000000e+00 : f32
      %28 = vector.broadcast %cst_23 : f32 to vector<8x128xf32>
      %c0_24 = arith.constant 0 : index
      %c0_25 = arith.constant 0 : index
      %29 = vector.load %arg8[%c0_24, %c0_25] : memref<8x128xf32, #tpu.memory_space<vmem>>, vector<8x128xf32>
      tpu.vector_store %arg8[%c0_24, %c0_25], %28 {strides = array<i32>} : memref<8x128xf32, #tpu.memory_space<vmem>>, vector<8x128xf32>,
      %cst_26 = arith.constant 0.000000e+00 : f32
      %30 = vector.broadcast %cst_26 : f32 to vector<8x128xf32>
      %c0_27 = arith.constant 0 : index
      %c0_28 = arith.constant 0 : index
      %31 = vector.load %arg9[%c0_27, %c0_28] : memref<8x128xf32, #tpu.memory_space<vmem>>, vector<8x128xf32>
      tpu.vector_store %arg9[%c0_27, %c0_28], %30 {strides = array<i32>} : memref<8x128xf32, #tpu.memory_space<vmem>>, vector<8x128xf32>,
    } else {
    }
    %c0 = arith.constant 0 : index
    %c0_1 = arith.constant 0 : index
    %c0_2 = arith.constant 0 : index
    %3 = vector.load %arg2[%c0, %c0_1, %c0_2] : memref<1x8x128xf32, #tpu.memory_space<vmem>>, vector<1x8x128xf32>
    %4 = vector.shape_cast %3 : vector<1x8x128xf32> to vector<8x128xf32>
    %c0_3 = arith.constant 0 : index
    %c0_4 = arith.constant 0 : index
    %c0_5 = arith.constant 0 : index
    %5 = vector.load %arg3[%c0_3, %c0_4, %c0_5] : memref<1x8x128xf32, #tpu.memory_space<vmem>>, vector<1x8x128xf32>
    %6 = vector.shape_cast %5 : vector<1x8x128xf32> to vector<8x128xf32>
    %7 = arith.subf %4, %6 : vector<8x128xf32>
    %c0_6 = arith.constant 0 : index
    %c0_7 = arith.constant 0 : index
    %c0_8 = arith.constant 0 : index
    %8 = vector.load %arg4[%c0_6, %c0_7, %c0_8] : memref<1x8x128xf32, #tpu.memory_space<vmem>>, vector<1x8x128xf32>
    %9 = vector.shape_cast %8 : vector<1x8x128xf32> to vector<8x128xf32>
    %c0_9 = arith.constant 0 : index
    %c0_10 = arith.constant 0 : index
    %c0_11 = arith.constant 0 : index
    %10 = vector.load %arg5[%c0_9, %c0_10, %c0_11] : memref<1x8x128xf32, #tpu.memory_space<vmem>>, vector<1x8x128xf32>
    %11 = vector.shape_cast %10 : vector<1x8x128xf32> to vector<8x128xf32>
    %12 = arith.subf %9, %11 : vector<8x128xf32>
    %13 = arith.mulf %7, %7 : vector<8x128xf32>
    %14 = arith.mulf %12, %12 : vector<8x128xf32>
    %c0_12 = arith.constant 0 : index
    %c0_13 = arith.constant 0 : index
    %15 = vector.load %arg8[%c0_12, %c0_13] : memref<8x128xf32, #tpu.memory_space<vmem>>, vector<8x128xf32>
    %16 = vector.shape_cast %13 : vector<8x128xf32> to vector<1x8x128xf32>
    %cst = arith.constant dense<0.000000e+00> : vector<8x128xf32>
    %17 = vector.multi_reduction <add>, %16, %cst [0] : vector<1x8x128xf32> to vector<8x128xf32>
    %18 = arith.addf %15, %17 : vector<8x128xf32>
    %c0_14 = arith.constant 0 : index
    %c0_15 = arith.constant 0 : index
    %19 = vector.load %arg8[%c0_14, %c0_15] : memref<8x128xf32, #tpu.memory_space<vmem>>, vector<8x128xf32>
    tpu.vector_store %arg8[%c0_14, %c0_15], %18 {strides = array<i32>} : memref<8x128xf32, #tpu.memory_space<vmem>>, vector<8x128xf32>,
    %c0_16 = arith.constant 0 : index
    %c0_17 = arith.constant 0 : index
    %20 = vector.load %arg9[%c0_16, %c0_17] : memref<8x128xf32, #tpu.memory_space<vmem>>, vector<8x128xf32>
    %21 = vector.shape_cast %14 : vector<8x128xf32> to vector<1x8x128xf32>
    %cst_18 = arith.constant dense<0.000000e+00> : vector<8x128xf32>
    %22 = vector.multi_reduction <add>, %21, %cst_18 [0] : vector<1x8x128xf32> to vector<8x128xf32>
    %23 = arith.addf %20, %22 : vector<8x128xf32>
    %c0_19 = arith.constant 0 : index
    %c0_20 = arith.constant 0 : index
    %24 = vector.load %arg9[%c0_19, %c0_20] : memref<8x128xf32, #tpu.memory_space<vmem>>, vector<8x128xf32>
    tpu.vector_store %arg9[%c0_19, %c0_20], %23 {strides = array<i32>} : memref<8x128xf32, #tpu.memory_space<vmem>>, vector<8x128xf32>,
    %c0_i32_21 = arith.constant 0 : i32
    %25 = arith.cmpi eq, %arg1, %c0_i32_21 : i32
    %26 = arith.extui %25 : i1 to i32
    %c0_i32_22 = arith.constant 0 : i32
    %27 = arith.cmpi ne, %26, %c0_i32_22 : i32
    scf.if %27 {
      %c0_23 = arith.constant 0 : index
      %c0_24 = arith.constant 0 : index
      %28 = vector.load %arg8[%c0_23, %c0_24] : memref<8x128xf32, #tpu.memory_space<vmem>>, vector<8x128xf32>
      %29 = vector.shape_cast %28 : vector<8x128xf32> to vector<1x8x128xf32>
      %cst_25 = arith.constant dense<0.000000e+00> : vector<1xf32>
      %30 = vector.multi_reduction <add>, %29, %cst_25 [1, 2] : vector<1x8x128xf32> to vector<1xf32>
      %31 = vector.shape_cast %30 : vector<1xf32> to vector<1x1x1xf32>
      %32 = vector.extract %31[0, 0, 0] : f32 from vector<1x1x1xf32>
      %33 = math.sqrt %32 : f32
      %c0_26 = arith.constant 0 : index
      %c0_27 = arith.constant 0 : index
      %34 = vector.load %arg9[%c0_26, %c0_27] : memref<8x128xf32, #tpu.memory_space<vmem>>, vector<8x128xf32>
      %35 = vector.shape_cast %34 : vector<8x128xf32> to vector<1x8x128xf32>
      %cst_28 = arith.constant dense<0.000000e+00> : vector<1xf32>
      %36 = vector.multi_reduction <add>, %35, %cst_28 [1, 2] : vector<1x8x128xf32> to vector<1xf32>
      %37 = vector.shape_cast %36 : vector<1xf32> to vector<1x1x1xf32>
      %38 = vector.extract %37[0, 0, 0] : f32 from vector<1x1x1xf32>
      %39 = math.sqrt %38 : f32
      %c0_29 = arith.constant 0 : index
      %c0_30 = arith.constant 0 : index
      %c0_31 = arith.constant 0 : index
      %40 = vector.load %arg6[%c0_29, %c0_30, %c0_31] : memref<1x8x8xf32, #tpu.memory_space<vmem>>, vector<1x8x8xf32>
      %41 = vector.shape_cast %40 : vector<1x8x8xf32> to vector<8x8xf32>
      %cst_32 = arith.constant dense<0.000000e+00> : vector<8x8xf32>
      %42 = tpu.matmul %41, %41, %cst_32 {dimension_numbers = #tpu.dot_dimension_numbers<[1], [1], [0], [0], [0, 0, 1, 0], [], []>} : vector<8x8xf32>, vector<8x8xf32>, vector<8x8xf32> -> vector<8x8xf32>
      %43 = arith.mulf %41, %41 : vector<8x8xf32>
      %44 = vector.shape_cast %43 : vector<8x8xf32> to vector<1x8x8xf32>
      %cst_33 = arith.constant dense<0.000000e+00> : vector<1xf32>
      %45 = vector.multi_reduction <add>, %44, %cst_33 [1, 2] : vector<1x8x8xf32> to vector<1xf32>
      %46 = vector.shape_cast %45 : vector<1xf32> to vector<1x1x1xf32>
      %47 = vector.extract %46[0, 0, 0] : f32 from vector<1x1x1xf32>
      %48 = arith.mulf %42, %42 : vector<8x8xf32>
      %49 = vector.shape_cast %48 : vector<8x8xf32> to vector<1x8x8xf32>
      %cst_34 = arith.constant dense<0.000000e+00> : vector<1xf32>
      %50 = vector.multi_reduction <add>, %49, %cst_34 [1, 2] : vector<1x8x8xf32> to vector<1xf32>
      %51 = vector.shape_cast %50 : vector<1xf32> to vector<1x1x1xf32>
      %52 = vector.extract %51[0, 0, 0] : f32 from vector<1x1x1xf32>
      %cst_35 = arith.constant 2.000000e+00 : f32
      %53 = arith.mulf %cst_35, %47 : f32
      %54 = arith.subf %52, %53 : f32
      %cst_36 = arith.constant 8.000000e+00 : f32
      %55 = arith.addf %54, %cst_36 : f32
      %cst_37 = arith.constant 0.000000e+00 : f32
      %56 = arith.maximumf %55, %cst_37 : f32
      %57 = math.sqrt %56 : f32
      %58 = math.sqrt %47 : f32
      %59 = tpu.iota {dimensions = array<i32: 2>} : vector<1x1x128xi32>
      %c0_i32_38 = arith.constant 0 : i32
      %60 = vector.broadcast %c0_i32_38 : i32 to vector<1x1x128xi32>
      %61 = arith.cmpi eq, %59, %60 : vector<1x1x128xi32>
      %c1_i32 = arith.constant 1 : i32
      %62 = vector.broadcast %c1_i32 : i32 to vector<1x1x128xi32>
      %63 = arith.cmpi eq, %59, %62 : vector<1x1x128xi32>
      %c2_i32 = arith.constant 2 : i32
      %64 = vector.broadcast %c2_i32 : i32 to vector<1x1x128xi32>
      %65 = arith.cmpi eq, %59, %64 : vector<1x1x128xi32>
      %c3_i32 = arith.constant 3 : i32
      %66 = vector.broadcast %c3_i32 : i32 to vector<1x1x128xi32>
      %67 = arith.cmpi eq, %59, %66 : vector<1x1x128xi32>
      %cst_39 = arith.constant 0.000000e+00 : f32
      %68 = vector.broadcast %58 : f32 to vector<1x1x128xf32>
      %69 = vector.broadcast %cst_39 : f32 to vector<1x1x128xf32>
      %70 = arith.select %67, %68, %69 : vector<1x1x128xi1>, vector<1x1x128xf32>
      %71 = vector.broadcast %57 : f32 to vector<1x1x128xf32>
      %72 = arith.select %65, %71, %70 : vector<1x1x128xi1>, vector<1x1x128xf32>
      %73 = vector.broadcast %39 : f32 to vector<1x1x128xf32>
      %74 = arith.select %63, %73, %72 : vector<1x1x128xi1>, vector<1x1x128xf32>
      %75 = vector.broadcast %33 : f32 to vector<1x1x128xf32>
      %76 = arith.select %61, %75, %74 : vector<1x1x128xi1>, vector<1x1x128xf32>
      %c0_40 = arith.constant 0 : index
      %c0_41 = arith.constant 0 : index
      %c0_42 = arith.constant 0 : index
      %77 = vector.load %arg7[%c0_40, %c0_41, %c0_42] : memref<1x1x128xf32, #tpu.memory_space<vmem>>, vector<1x1x128xf32>
      tpu.vector_store %arg7[%c0_40, %c0_41, %c0_42], %76 {strides = array<i32>} : memref<1x1x128xf32, #tpu.memory_space<vmem>>, vector<1x1x128xf32>,
    } else {
    }
    return
  }
  func.func @transform_0(%arg0: i32, %arg1: i32) -> (i32, i32, i32) {
    %c0_i32 = arith.constant 0 : i32
    %c0_i32_0 = arith.constant 0 : i32
    return %arg0, %arg1, %c0_i32 : i32, i32, i32
  }
  func.func @transform_1(%arg0: i32, %arg1: i32) -> (i32, i32, i32) {
    %c0_i32 = arith.constant 0 : i32
    %c0_i32_0 = arith.constant 0 : i32
    return %arg0, %arg1, %c0_i32 : i32, i32, i32
  }
  func.func @transform_2(%arg0: i32, %arg1: i32) -> (i32, i32, i32) {
    %c0_i32 = arith.constant 0 : i32
    %c0_i32_0 = arith.constant 0 : i32
    return %arg0, %arg1, %c0_i32 : i32, i32, i32
  }
  func.func @transform_3(%arg0: i32, %arg1: i32) -> (i32, i32, i32) {
    %c0_i32 = arith.constant 0 : i32
    %c0_i32_0 = arith.constant 0 : i32
    return %arg0, %arg1, %c0_i32 : i32, i32, i32
  }
  func.func @transform_4(%arg0: i32, %arg1: i32) -> (i32, i32, i32) {
    %c0_i32 = arith.constant 0 : i32
    %c0_i32_0 = arith.constant 0 : i32
    %c0_i32_1 = arith.constant 0 : i32
    return %arg0, %c0_i32, %c0_i32_0 : i32, i32, i32
  }
  func.func @transform_5(%arg0: i32, %arg1: i32) -> (i32, i32, i32) {
    %c0_i32 = arith.constant 0 : i32
    %c0_i32_0 = arith.constant 0 : i32
    %c0_i32_1 = arith.constant 0 : i32
    return %arg0, %c0_i32, %c0_i32_0 : i32, i32, i32
  }
}

</mosaic_0001>

<llo_original>
// kernel: tpu_custom_call.1
$region0: #{tpu_custom_call.1}
  #allocation0 [shape = 'u32[]', space=smem, size = 0x4, offset = 0x4, fixed_abs, tag = 'smem constant byte address 0x4 - core index']
  #allocation1 [shape = 'u32[144,128]{1,0:T(1,128)}', space=vmem, size = 0x12000, scoped, tag = 'internal scratch']
  #allocation2 [shape = 'f32[8,128]{1,0:T(8,128)}', space=vmem, size = 0x1000, scoped, tag = 'scratch operand']
  #allocation3 [shape = 'f32[8,128]{1,0:T(8,128)}', space=vmem, size = 0x1000, scoped, tag = 'scratch operand']
  %s0 = inlined_call_operand.hbm [shape: f32[2,8,128], index: 0, kind: input, shape index: {}]
  %s1 = inlined_call_operand.hbm [shape: f32[2,8,128], index: 1, kind: input, shape index: {}]
  %s2 = inlined_call_operand.hbm [shape: f32[2,8,128], index: 2, kind: input, shape index: {}]
  %s3 = inlined_call_operand.hbm [shape: f32[2,8,128], index: 3, kind: input, shape index: {}]
  %s4 = inlined_call_operand.hbm [shape: f32[2,8,8], index: 4, kind: input, shape index: {}]
  %s5 = inlined_call_operand.hbm [shape: f32[2,1,128], index: 5, kind: output, shape index: {}]
  %s6 = sld [smem:[#allocation0]]
  $region81: #{tpu_custom_call.1} parent=0
    _
  %s8 = ssub.s32 1, %s6
  %s9 = scalar_select 0, %s8, %s6
  $region1: #{tpu_custom_call.1} parent=0
    #allocation4 [shape = 'u8[8192]{0}', space=vmem, size = 0x2000, scoped, tag = 'input window, operand 0']
    #allocation5 [shape = 's32[2]{0}', space=sflag, size = 0x8, scoped, tag = 'scoped memory for tpu_custom_call.1']
    #allocation6 [shape = 's32[2]{0}', space=sflag, size = 0x8, scoped, tag = 'scoped memory for tpu_custom_call.1']
    #allocation7 [shape = 'u8[8192]{0}', space=vmem, size = 0x2000, scoped, tag = 'input window, operand 1']
    #allocation8 [shape = 's32[2]{0}', space=sflag, size = 0x8, scoped, tag = 'scoped memory for tpu_custom_call.1']
    #allocation9 [shape = 'u8[8192]{0}', space=vmem, size = 0x2000, scoped, tag = 'input window, operand 2']
    #allocation10 [shape = 'u8[8192]{0}', space=vmem, size = 0x2000, scoped, tag = 'input window, operand 3']
    #allocation11 [shape = 's32[2]{0}', space=sflag, size = 0x8, scoped, tag = 'scoped memory for tpu_custom_call.1']
    #allocation12 [shape = 'u8[8192]{0}', space=vmem, size = 0x2000, scoped, tag = 'input window, operand 4']
    #allocation13 [shape = 'u8[1024]{0}', space=vmem, size = 0x400, scoped, tag = 'output window, operand 0']
    %10 = vsyncpa [#allocation5], 0
    %s11 = scalar_lea.sflag [#allocation5], 1
    %12 = vsyncpa %s11, 0
    %13 = vsyncpa [#allocation8], 0
    %s14 = scalar_lea.sflag [#allocation8], 1
    %15 = vsyncpa %s14, 0
    %16 = vsyncpa [#allocation11], 0
    %s17 = scalar_lea.sflag [#allocation11], 1
    %18 = vsyncpa %s17, 0
    %19 = vsyncpa [#allocation6], 0
    %s20 = scalar_lea.sflag [#allocation6], 1
    %21 = vsyncpa %s20, 0
    loop: start=0, step=1, limit=4
    $region2: #{tpu_custom_call.1} parent=1 // loop_pre_header
      _
    $region3: #{tpu_custom_call.1} parent=1 // loop_header
      %s23 = sphi 0, %s27
      %p24 = scmp.ge.s32.totalorder %s23, 4
      %s30 = sphi 0, %s42
      %s31 = sphi 0, %s38
      %s32 = sphi 0, %s30
      %s33 = sphi 0, %s31
      %s34 = sphi 0, %s32
      %s35 = sphi 0, %s33
      %s47 = sphi 0, %s49
      %s50 = sphi 0, %s47
      %s51 = sphi 0, %s50
      %s67 = sphi 0, %s51
      %s75 = sphi 0, %s77
      %s78 = sphi 0, %s75
      %s79 = sphi 0, %s78
      %s95 = sphi 0, %s79
      %s103 = sphi 0, %s105
      %s106 = sphi 0, %s103
      %s107 = sphi 0, %s106
      %s123 = sphi 0, %s107
      %s131 = sphi 0, %s133
      %s134 = sphi 0, %s131
      %s135 = sphi 0, %s134
      %s151 = sphi 0, %s135
      %s157 = sphi 0, %s159
      %s160 = sphi 0, %s157
      %s161 = sphi 0, %s160
      %s177 = sphi 0, %s161
      %s183 = sphi 0, %s185
      %s186 = sphi 0, %s183
      %s187 = sphi 0, %s186
      %s203 = sphi 0, %s187
    $region4: #{tpu_custom_call.1} parent=1 // loop_header_branch
      %26 = sbr.rel (%p24) target = $region8
    $region5: #{tpu_custom_call.1} parent=1 // loop_body
      %s28 = ssub.s32 %s23, 1
      %s29 = ssub.s32 %s23, 2
      %s36 = sadd.s32 1, %s31
      %p37 = scmp.ge.s32.totalorder %s36, 1
      %s38 = scalar_select %p37, 0, %s36
      %s39 = sadd.s32 1, %s30
      %s40 = scalar_select %p37, %s39, %s30
      %p41 = scmp.ge.s32.totalorder %s40, 2
      %s42 = scalar_select %p41, 0, %s40
      %s43 = ssub.s32 %s30, %s42
      %s44 = ssub.s32 %s31, %s38
      %s45 = sor.u32 %s43, %s44
      %p46 = scmp.eq.s32.totalorder %s45, 0
      %s48 = sadd.s32 %s47, 1
      %s49 = scalar_select %p46, %s47, %s48
      %p52 = pneg %p46
      %p53 = scmp.eq.s32.totalorder %s23, 1
      %p54 = por %p52, %p53
      %p55 = scmp.ne.s32.totalorder %s47, %s50
      %p56 = scmp.eq.s32.totalorder %s23, 0
      %p57 = por %p55, %p56
      %p58 = scmp.ne.s32.totalorder %s47, %s50
      %p59 = scmp.eq.s32.totalorder %s28, 1
      %p60 = por %p58, %p59
      %p61 = scmp.ne.s32.totalorder %s50, %s51
      %p62 = scmp.eq.s32.totalorder %s28, 0
      %p63 = por %p61, %p62
      %p64 = scmp.ne.s32.totalorder %s50, %s51
      %p65 = scmp.eq.s32.totalorder %s29, 1
      %p66 = por %p64, %p65
      %p68 = scmp.ne.s32.totalorder %s51, %s67
      %p69 = scmp.eq.s32.totalorder %s29, 0
      %p70 = por %p68, %p69
      %s71 = ssub.s32 %s30, %s42
      %s72 = ssub.s32 %s31, %s38
      %s73 = sor.u32 %s71, %s72
      %p74 = scmp.eq.s32.totalorder %s73, 0
      %s76 = sadd.s32 %s75, 1
      %s77 = scalar_select %p74, %s75, %s76
      %p80 = pneg %p74
      %p81 = scmp.eq.s32.totalorder %s23, 1
      %p82 = por %p80, %p81
      %p83 = scmp.ne.s32.totalorder %s75, %s78
      %p84 = scmp.eq.s32.totalorder %s23, 0
      %p85 = por %p83, %p84
      %p86 = scmp.ne.s32.totalorder %s75, %s78
      %p87 = scmp.eq.s32.totalorder %s28, 1
      %p88 = por %p86, %p87
      %p89 = scmp.ne.s32.totalorder %s78, %s79
      %p90 = scmp.eq.s32.totalorder %s28, 0
      %p91 = por %p89, %p90
      %p92 = scmp.ne.s32.totalorder %s78, %s79
      %p93 = scmp.eq.s32.totalorder %s29, 1
      %p94 = por %p92, %p93
      %p96 = scmp.ne.s32.totalorder %s79, %s95
      %p97 = scmp.eq.s32.totalorder %s29, 0
      %p98 = por %p96, %p97
      %s99 = ssub.s32 %s30, %s42
      %s100 = ssub.s32 %s31, %s38
      %s101 = sor.u32 %s99, %s100
      %p102 = scmp.eq.s32.totalorder %s101, 0
      %s104 = sadd.s32 %s103, 1
      %s105 = scalar_select %p102, %s103, %s104
      %p108 = pneg %p102
      %p109 = scmp.eq.s32.totalorder %s23, 1
      %p110 = por %p108, %p109
      %p111 = scmp.ne.s32.totalorder %s103, %s106
      %p112 = scmp.eq.s32.totalorder %s23, 0
      %p113 = por %p111, %p112
      %p114 = scmp.ne.s32.totalorder %s103, %s106
      %p115 = scmp.eq.s32.totalorder %s28, 1
      %p116 = por %p114, %p115
      %p117 = scmp.ne.s32.totalorder %s106, %s107
      %p118 = scmp.eq.s32.totalorder %s28, 0
      %p119 = por %p117, %p118
      %p120 = scmp.ne.s32.totalorder %s106, %s107
      %p121 = scmp.eq.s32.totalorder %s29, 1
      %p122 = por %p120, %p121
      %p124 = scmp.ne.s32.totalorder %s107, %s123
      %p125 = scmp.eq.s32.totalorder %s29, 0
      %p126 = por %p124, %p125
      %s127 = ssub.s32 %s30, %s42
      %s128 = ssub.s32 %s31, %s38
      %s129 = sor.u32 %s127, %s128
      %p130 = scmp.eq.s32.totalorder %s129, 0
      %s132 = sadd.s32 %s131, 1
      %s133 = scalar_select %p130, %s131, %s132
      %p136 = pneg %p130
      %p137 = scmp.eq.s32.totalorder %s23, 1
      %p138 = por %p136, %p137
      %p139 = scmp.ne.s32.totalorder %s131, %s134
      %p140 = scmp.eq.s32.totalorder %s23, 0
      %p141 = por %p139, %p140
      %p142 = scmp.ne.s32.totalorder %s131, %s134
      %p143 = scmp.eq.s32.totalorder %s28, 1
      %p144 = por %p142, %p143
      %p145 = scmp.ne.s32.totalorder %s134, %s135
      %p146 = scmp.eq.s32.totalorder %s28, 0
      %p147 = por %p145, %p146
      %p148 = scmp.ne.s32.totalorder %s134, %s135
      %p149 = scmp.eq.s32.totalorder %s29, 1
      %p150 = por %p148, %p149
      %p152 = scmp.ne.s32.totalorder %s135, %s151
      %p153 = scmp.eq.s32.totalorder %s29, 0
      %p154 = por %p152, %p153
      %s155 = ssub.s32 %s30, %s42
      %p156 = scmp.eq.s32.totalorder %s155, 0
      %s158 = sadd.s32 %s157, 1
      %s159 = scalar_select %p156, %s157, %s158
      %p162 = pneg %p156
      %p163 = scmp.eq.s32.totalorder %s23, 1
      %p164 = por %p162, %p163
      %p165 = scmp.ne.s32.totalorder %s157, %s160
      %p166 = scmp.eq.s32.totalorder %s23, 0
      %p167 = por %p165, %p166
      %p168 = scmp.ne.s32.totalorder %s157, %s160
      %p169 = scmp.eq.s32.totalorder %s28, 1
      %p170 = por %p168, %p169
      %p171 = scmp.ne.s32.totalorder %s160, %s161
      %p172 = scmp.eq.s32.totalorder %s28, 0
      %p173 = por %p171, %p172
      %p174 = scmp.ne.s32.totalorder %s160, %s161
      %p175 = scmp.eq.s32.totalorder %s29, 1
      %p176 = por %p174, %p175
      %p178 = scmp.ne.s32.totalorder %s161, %s177
      %p179 = scmp.eq.s32.totalorder %s29, 0
      %p180 = por %p178, %p179
      %s181 = ssub.s32 %s30, %s42
      %p182 = scmp.eq.s32.totalorder %s181, 0
      %s184 = sadd.s32 %s183, 1
      %s185 = scalar_select %p182, %s183, %s184
      %p188 = pneg %p182
      %p189 = scmp.eq.s32.totalorder %s23, 1
      %p190 = por %p188, %p189
      %p191 = scmp.ne.s32.totalorder %s183, %s186
      %p192 = scmp.eq.s32.totalorder %s23, 0
      %p193 = por %p191, %p192
      %p194 = scmp.ne.s32.totalorder %s183, %s186
      %p195 = scmp.eq.s32.totalorder %s28, 1
      %p196 = por %p194, %p195
      %p197 = scmp.ne.s32.totalorder %s186, %s187
      %p198 = scmp.eq.s32.totalorder %s28, 0
      %p199 = por %p197, %p198
      %p200 = scmp.ne.s32.totalorder %s186, %s187
      %p201 = scmp.eq.s32.totalorder %s29, 1
      %p202 = por %p200, %p201
      %p204 = scmp.ne.s32.totalorder %s187, %s203
      %p205 = scmp.eq.s32.totalorder %s29, 0
      %p206 = por %p204, %p205
      %p207 = scmp.le.s32.totalorder 1, %s23
      %p208 = scmp.lt.s32.totalorder %s23, 3
      %p209 = pnand %p207, %p208
      %p210 = pneg %p209
      // Predicated region
      $region9: #{tpu_custom_call.1} parent=5 // pred_check
        _
      $region10: #{tpu_custom_call.1} parent=5 // pred_check_branch
        %212 = sbr.rel (%p209) target = $region12
      $region11: #{tpu_custom_call.1} parent=5 // pred_region
        %s213 = ssub.s32 %s23, 1
      $region12: #{tpu_custom_call.1} parent=5 // pred_fallthru
        _
      %p214 = scmp.lt.s32.totalorder %s23, 2
      // Predicated region
      $region13: #{tpu_custom_call.1} parent=5 // pred_check
        %p215 = pneg %p214
      $region14: #{tpu_custom_call.1} parent=5 // pred_check_branch
        %217 = sbr.rel (%p215) target = $region16
      $region15: #{tpu_custom_call.1} parent=5 // pred_region
        // Predicated region
        $region17: #{tpu_custom_call.1} parent=15 // pred_check
          %p218 = pneg %p57
        $region18: #{tpu_custom_call.1} parent=15 // pred_check_branch
          %220 = sbr.rel (%p218) target = $region20
        $region19: #{tpu_custom_call.1} parent=15 // pred_region
          %s221 = sand.u32 %s47, 1
          %s222 = scalar_lea.sflag [#allocation5], %s221
          %s223 = sand.u32 %s47, 1
          %s224 = smul.addr %s223, 8
          %s225 = scalar_lea.vmem [#allocation4], %s224
          %s227 = ssub.s32 128, 128
          %228 = vsyncadd %s222, %s227
          %s229 = sadd.s32 %s31, %s30
          %s230 = smul.addr %s229, 128
          %s231 = scalar_lea.hbm %s0, %s230
          %s233 = sshll.u32 %s225, 4
          %s234 = int_to_ptr.vmem [resolvable:$true] %s233
          %236 = dma.hbm_to_vmem [thread:$0]  %s231, 128, %s234, %s222
        $region20: #{tpu_custom_call.1} parent=15 // pred_fallthru
          _
        // Predicated region
        $region21: #{tpu_custom_call.1} parent=15 // pred_check
          %p237 = pneg %p85
        $region22: #{tpu_custom_call.1} parent=15 // pred_check_branch
          %239 = sbr.rel (%p237) target = $region24
        $region23: #{tpu_custom_call.1} parent=15 // pred_region
          %s240 = sand.u32 %s23, 1
          %s241 = scalar_lea.sflag [#allocation8], %s240
          %s242 = sand.u32 %s75, 1
          %s243 = smul.addr %s242, 8
          %s244 = scalar_lea.vmem [#allocation7], %s243
          %s246 = ssub.s32 128, 128
          %247 = vsyncadd %s241, %s246
          %s248 = sadd.s32 %s31, %s30
          %s249 = smul.addr %s248, 128
          %s250 = scalar_lea.hbm %s1, %s249
          %s252 = sshll.u32 %s244, 4
          %s253 = int_to_ptr.vmem [resolvable:$true] %s252
          %255 = dma.hbm_to_vmem [thread:$0]  %s250, 128, %s253, %s241
        $region24: #{tpu_custom_call.1} parent=15 // pred_fallthru
          _
        // Predicated region
        $region25: #{tpu_custom_call.1} parent=15 // pred_check
          %p256 = pneg %p113
        $region26: #{tpu_custom_call.1} parent=15 // pred_check_branch
          %258 = sbr.rel (%p256) target = $region28
        $region27: #{tpu_custom_call.1} parent=15 // pred_region
          %s259 = sand.u32 %s23, 1
          %s260 = scalar_lea.sflag [#allocation8], %s259
          %s261 = sand.u32 %s103, 1
          %s262 = smul.addr %s261, 8
          %s263 = scalar_lea.vmem [#allocation9], %s262
          %s265 = ssub.s32 128, 128
          %266 = vsyncadd %s260, %s265
          %s267 = sadd.s32 %s31, %s30
          %s268 = smul.addr %s267, 128
          %s269 = scalar_lea.hbm %s2, %s268
          %s271 = sshll.u32 %s263, 4
          %s272 = int_to_ptr.vmem [resolvable:$true] %s271
          %274 = dma.hbm_to_vmem [thread:$0]  %s269, 128, %s272, %s260
        $region28: #{tpu_custom_call.1} parent=15 // pred_fallthru
          _
        // Predicated region
        $region29: #{tpu_custom_call.1} parent=15 // pred_check
          %p275 = pneg %p141
        $region30: #{tpu_custom_call.1} parent=15 // pred_check_branch
          %277 = sbr.rel (%p275) target = $region32
        $region31: #{tpu_custom_call.1} parent=15 // pred_region
          %s278 = sand.u32 %s23, 1
          %s279 = scalar_lea.sflag [#allocation11], %s278
          %s280 = sand.u32 %s131, 1
          %s281 = smul.addr %s280, 8
          %s282 = scalar_lea.vmem [#allocation10], %s281
          %s284 = ssub.s32 128, 128
          %285 = vsyncadd %s279, %s284
          %s286 = sadd.s32 %s31, %s30
          %s287 = smul.addr %s286, 128
          %s288 = scalar_lea.hbm %s3, %s287
          %s290 = sshll.u32 %s282, 4
          %s291 = int_to_ptr.vmem [resolvable:$true] %s290
          %293 = dma.hbm_to_vmem [thread:$0]  %s288, 128, %s291, %s279
        $region32: #{tpu_custom_call.1} parent=15 // pred_fallthru
          _
        // Predicated region
        $region33: #{tpu_custom_call.1} parent=15 // pred_check
          %p294 = pneg %p167
        $region34: #{tpu_custom_call.1} parent=15 // pred_check_branch
          %296 = sbr.rel (%p294) target = $region36
        $region35: #{tpu_custom_call.1} parent=15 // pred_region
          %s297 = sand.u32 %s23, 1
          %s298 = scalar_lea.sflag [#allocation11], %s297
          %s299 = sand.u32 %s157, 1
          %s300 = smul.addr %s299, 8
          %s301 = scalar_lea.vmem [#allocation12], %s300
          %s303 = ssub.s32 128, 128
          %304 = vsyncadd %s298, %s303
          %s305 = smul.addr %s30, 128
          %s306 = scalar_lea.hbm %s4, %s305
          %s308 = sshll.u32 %s301, 4
          %s309 = int_to_ptr.vmem [resolvable:$true] %s308
          %311 = dma.hbm_to_vmem [thread:$0]  %s306, 128, %s309, %s298
        $region36: #{tpu_custom_call.1} parent=15 // pred_fallthru
          _
      $region16: #{tpu_custom_call.1} parent=5 // pred_fallthru
        _
      %p312 = scmp.le.s32.totalorder 1, %s23
      %p313 = scmp.lt.s32.totalorder %s23, 3
      %p314 = pnand %p312, %p313
      %p315 = pneg %p314
      // Predicated region
      $region37: #{tpu_custom_call.1} parent=5 // pred_check
        _
      $region38: #{tpu_custom_call.1} parent=5 // pred_check_branch
        %317 = sbr.rel (%p314) target = $region40
      $region39: #{tpu_custom_call.1} parent=5 // pred_region
        %s318 = ssub.s32 %s23, 1
        %s319 = sand.u32 %s50, 1
        %s320 = scalar_lea.sflag [#allocation5], %s319
        %s321 = sand.u32 %s50, 1
        %s322 = smul.addr %s321, 8
        %s323 = scalar_lea.vmem [#allocation4], %s322
        // Predicated region
        $region41: #{tpu_custom_call.1} parent=39 // pred_check
          %p324 = pneg %p63
        $region42: #{tpu_custom_call.1} parent=39 // pred_check_branch
          %326 = sbr.rel (%p324) target = $region44
        $region43: #{tpu_custom_call.1} parent=39 // pred_region
          %327 = dma.done %s320, 128
        $region44: #{tpu_custom_call.1} parent=39 // pred_fallthru
          _
        %s328 = sand.u32 %s28, 1
        %s329 = scalar_lea.sflag [#allocation8], %s328
        %s330 = sand.u32 %s78, 1
        %s331 = smul.addr %s330, 8
        %s332 = scalar_lea.vmem [#allocation7], %s331
        // Predicated region
        $region45: #{tpu_custom_call.1} parent=39 // pred_check
          %p333 = pneg %p91
        $region46: #{tpu_custom_call.1} parent=39 // pred_check_branch
          %335 = sbr.rel (%p333) target = $region48
        $region47: #{tpu_custom_call.1} parent=39 // pred_region
          %336 = dma.done %s329, 128
        $region48: #{tpu_custom_call.1} parent=39 // pred_fallthru
          _
        %s337 = sand.u32 %s28, 1
        %s338 = scalar_lea.sflag [#allocation8], %s337
        %s339 = sand.u32 %s106, 1
        %s340 = smul.addr %s339, 8
        %s341 = scalar_lea.vmem [#allocation9], %s340
        // Predicated region
        $region49: #{tpu_custom_call.1} parent=39 // pred_check
          %p342 = pneg %p119
        $region50: #{tpu_custom_call.1} parent=39 // pred_check_branch
          %344 = sbr.rel (%p342) target = $region52
        $region51: #{tpu_custom_call.1} parent=39 // pred_region
          %345 = dma.done %s338, 128
        $region52: #{tpu_custom_call.1} parent=39 // pred_fallthru
          _
        %s346 = sand.u32 %s28, 1
        %s347 = scalar_lea.sflag [#allocation11], %s346
        %s348 = sand.u32 %s134, 1
        %s349 = smul.addr %s348, 8
        %s350 = scalar_lea.vmem [#allocation10], %s349
        // Predicated region
        $region53: #{tpu_custom_call.1} parent=39 // pred_check
          %p351 = pneg %p147
        $region54: #{tpu_custom_call.1} parent=39 // pred_check_branch
          %353 = sbr.rel (%p351) target = $region56
        $region55: #{tpu_custom_call.1} parent=39 // pred_region
          %354 = dma.done %s347, 128
        $region56: #{tpu_custom_call.1} parent=39 // pred_fallthru
          _
        %s355 = sand.u32 %s28, 1
        %s356 = scalar_lea.sflag [#allocation11], %s355
        %s357 = sand.u32 %s160, 1
        %s358 = smul.addr %s357, 8
        %s359 = scalar_lea.vmem [#allocation12], %s358
        // Predicated region
        $region57: #{tpu_custom_call.1} parent=39 // pred_check
          %p360 = pneg %p173
        $region58: #{tpu_custom_call.1} parent=39 // pred_check_branch
          %362 = sbr.rel (%p360) target = $region60
        $region59: #{tpu_custom_call.1} parent=39 // pred_region
          %363 = dma.done %s356, 128
        $region60: #{tpu_custom_call.1} parent=39 // pred_fallthru
          _
        %s364 = sand.u32 %s50, 1
        %s365 = scalar_lea.sflag [#allocation5], %s364
        %s366 = sand.u32 %s50, 1
        %s367 = smul.addr %s366, 8
        %s368 = scalar_lea.vmem [#allocation4], %s367
        %p369 = pneg %p63
        %p370 = pneg %p60
        %s371 = sand.u32 %s28, 1
        %s372 = scalar_lea.sflag [#allocation8], %s371
        %s373 = sand.u32 %s78, 1
        %s374 = smul.addr %s373, 8
        %s375 = scalar_lea.vmem [#allocation7], %s374
        %p376 = pneg %p91
        %p377 = pneg %p88
        %s378 = sand.u32 %s28, 1
        %s379 = scalar_lea.sflag [#allocation8], %s378
        %s380 = sand.u32 %s106, 1
        %s381 = smul.addr %s380, 8
        %s382 = scalar_lea.vmem [#allocation9], %s381
        %p383 = pneg %p119
        %p384 = pneg %p116
        %s385 = sand.u32 %s28, 1
        %s386 = scalar_lea.sflag [#allocation11], %s385
        %s387 = sand.u32 %s134, 1
        %s388 = smul.addr %s387, 8
        %s389 = scalar_lea.vmem [#allocation10], %s388
        %p390 = pneg %p147
        %p391 = pneg %p144
        %s392 = sand.u32 %s28, 1
        %s393 = scalar_lea.sflag [#allocation11], %s392
        %s394 = sand.u32 %s160, 1
        %s395 = smul.addr %s394, 8
        %s396 = scalar_lea.vmem [#allocation12], %s395
        %p397 = pneg %p173
        %p398 = pneg %p170
        %p399 = pneg %p199
        %p400 = pneg %p196
        %s401 = sand.u32 %s186, 1
        %s402 = scalar_lea.sflag [#allocation6], %s401
        %s403 = sand.u32 %s186, 1
        %s404 = scalar_lea.vmem [#allocation13], %s403
        %p405 = scmp.eq.s32.totalorder %s33, 0
        // Predicated region
        $region61: #{tpu_custom_call.1} parent=39 // pred_check
          %p406 = pneg %p405
        $region62: #{tpu_custom_call.1} parent=39 // pred_check_branch
          %408 = sbr.rel (%p406) target = $region64
        $region63: #{tpu_custom_call.1} parent=39 // pred_region
          %409 = vst [vmem:[#allocation2] sm:$0xff] 0.0
          %410 = vst [vmem:[#allocation3] sm:$0xff] 0.0
        $region64: #{tpu_custom_call.1} parent=39 // pred_fallthru
          _
        %v411 = vld [vmem:[%s323] sm:$0xff]
        %v412 = vld [vmem:[%s332] sm:$0xff]
        %v413 = vsub.f32 %v411, %v412
        %v414 = vld [vmem:[%s341] sm:$0xff]
        %v415 = vld [vmem:[%s350] sm:$0xff]
        %v416 = vsub.f32 %v414, %v415
        %v417 = vmul.f32 %v413, %v413
        %v418 = vmul.f32 %v416, %v416
        %v419 = vld [vmem:[#allocation2] sm:$0xff]
        %v420 = vadd.f32 %v417, 0.0
        %v421 = vadd.f32 %v419, %v420
        %422 = vst [vmem:[#allocation2] sm:$0xff] %v421
        %v423 = vld [vmem:[#allocation3] sm:$0xff]
        %v424 = vadd.f32 %v418, 0.0
        %v425 = vadd.f32 %v423, %v424
        %426 = vst [vmem:[#allocation3] sm:$0xff] %v425
        // Predicated region
        $region65: #{tpu_custom_call.1} parent=39 // pred_check
          %p427 = pneg %p405
        $region66: #{tpu_custom_call.1} parent=39 // pred_check_branch
          %429 = sbr.rel (%p427) target = $region68
        $region67: #{tpu_custom_call.1} parent=39 // pred_region
          %v430 = vld [vmem:[#allocation2] sm:$0xff]
          %431 = vadd.xlane.f32.xlu0 %v430
          %v432 = vpop.xlane.xlu0 %431
          %v433 = vrot.slane %v432, 4
          %v434 = vadd.f32 %v432, %v433
          %v435 = vrot.slane %v434, 2
          %v436 = vadd.f32 %v434, %v435
          %v437 = vrot.slane %v436, 1
          %v438 = vadd.f32 %v436, %v437
          %s439 = vtos %v438
          %v440 = vstv %s439
          %v441 = vrsqrt.pop %v440
          %v442 = vmul.f32 %v440, %v441
          %vm443 = vcmp.eq.f32.partialorder %v440, inf
          %v444 = vsel %vm443, %v440, %v442
          %vm445 = vcmp.eq.f32.partialorder %v440, 0.0
          %v446 = vand.u32 %v440, 2147483648
          %v447 = vsel %vm445, %v446, %v444
          %s448 = vtos %v447
          %v449 = vld [vmem:[#allocation3] sm:$0xff]
          %450 = vadd.xlane.f32.xlu0 %v449
          %v451 = vpop.xlane.xlu0 %450
          %v452 = vrot.slane %v451, 4
          %v453 = vadd.f32 %v451, %v452
          %v454 = vrot.slane %v453, 2
          %v455 = vadd.f32 %v453, %v454
          %v456 = vrot.slane %v455, 1
          %v457 = vadd.f32 %v455, %v456
          %s458 = vtos %v457
          %v459 = vstv %s458
          %v460 = vrsqrt.pop %v459
          %v461 = vmul.f32 %v459, %v460
          %vm462 = vcmp.eq.f32.partialorder %v459, inf
          %v463 = vsel %vm462, %v459, %v461
          %vm464 = vcmp.eq.f32.partialorder %v459, 0.0
          %v465 = vand.u32 %v459, 2147483648
          %v466 = vsel %vm464, %v465, %v463
          %s467 = vtos %v466
          %v468 = vld [vmem:[%s359] sm:$0xff]
          %vm469 = vcmask 64512
          %v471 = vsel %vm469, %v468, 0
          %473 = vmatprep.subr.mxu0 0.0
          %474 = vmatpush1.xpose.msra.mxu0 0.0
          %475 = vmatprep.subr.mxu0 0.0
          %476 = vmatpush1.xpose.msra.mxu0 0.0
          %477 = vmatprep.subr.mxu0 0.0
          %478 = vmatpush1.xpose.msra.mxu0 0.0
          %479 = vmatprep.subr.mxu0 0.0
          %480 = vmatpush1.xpose.msra.mxu0 0.0
          %481 = vmatprep.subr.mxu0 0.0
          %482 = vmatpush1.xpose.msra.mxu0 0.0
          %483 = vmatprep.subr.mxu0 0.0
          %484 = vmatpush1.xpose.msra.mxu0 0.0
          %485 = vmatprep.subr.mxu0 0.0
          %486 = vmatpush1.xpose.msra.mxu0 0.0
          %487 = vmatprep.subr.mxu0 0.0
          %488 = vmatpush1.xpose.msra.mxu0 0.0
          %489 = vmatprep.subr.mxu0 0.0
          %490 = vmatpush1.xpose.msra.mxu0 0.0
          %491 = vmatprep.subr.mxu0 0.0
          %492 = vmatpush1.xpose.msra.mxu0 0.0
          %493 = vmatprep.subr.mxu0 0.0
          %494 = vmatpush1.xpose.msra.mxu0 0.0
          %495 = vmatprep.subr.mxu0 0.0
          %496 = vmatpush1.xpose.msra.mxu0 0.0
          %497 = vmatprep.subr.mxu0 0.0
          %498 = vmatpush1.xpose.msra.mxu0 0.0
          %499 = vmatprep.subr.mxu0 0.0
          %500 = vmatpush1.xpose.msra.mxu0 0.0
          %501 = vmatprep.subr.mxu0 0.0
          %502 = vmatpush1.xpose.msra.mxu0 0.0
          %503 = vmatprep.subr.mxu0 0.0
          %504 = vmatpush1.xpose.msra.mxu0 %v471
          %505 = vmatprep.subr.mxu0 0.0
          %506 = vmatpush2.xpose.msra.mxu0 0.0
          %507 = vmatprep.subr.mxu0 0.0
          %508 = vmatpush2.xpose.msra.mxu0 0.0
          %509 = vmatprep.subr.mxu0 0.0
          %510 = vmatpush2.xpose.msra.mxu0 0.0
          %511 = vmatprep.subr.mxu0 0.0
          %512 = vmatpush2.xpose.msra.mxu0 0.0
          %513 = vmatprep.subr.mxu0 0.0
          %514 = vmatpush2.xpose.msra.mxu0 0.0
          %515 = vmatprep.subr.mxu0 0.0
          %516 = vmatpush2.xpose.msra.mxu0 0.0
          %517 = vmatprep.subr.mxu0 0.0
          %518 = vmatpush2.xpose.msra.mxu0 0.0
          %519 = vmatprep.subr.mxu0 0.0
          %520 = vmatpush2.xpose.msra.mxu0 0.0
          %521 = vmatprep.subr.mxu0 0.0
          %522 = vmatpush2.xpose.msra.mxu0 0.0
          %523 = vmatprep.subr.mxu0 0.0
          %524 = vmatpush2.xpose.msra.mxu0 0.0
          %525 = vmatprep.subr.mxu0 0.0
          %526 = vmatpush2.xpose.msra.mxu0 0.0
          %527 = vmatprep.subr.mxu0 0.0
          %528 = vmatpush2.xpose.msra.mxu0 0.0
          %529 = vmatprep.subr.mxu0 0.0
          %530 = vmatpush2.xpose.msra.mxu0 0.0
          %531 = vmatprep.subr.mxu0 0.0
          %532 = vmatpush2.xpose.msra.mxu0 0.0
          %533 = vmatprep.subr.mxu0 0.0
          %534 = vmatpush2.xpose.msra.mxu0 0.0
          %535 = vmatprep.subr.mxu0 0.0
          %536 = vmatpush2.xpose.msra.mxu0 0.0
          %537 = vmatprep.mubr.f32.mxu0 0.0
          %538 = vmatmul.mubr.f32.gmra.mxu0 %v471
          %v539 = vpop.f32.mrf.mxu0
          %v540 = vadd.f32 0.0, %v539
          %v541 = vpop.f32.mrf.mxu0
          %542 = vdwg.mxu0
          %v543 = vmul.f32 %v468, %v468
          %v544 = vsel %vm469, %v543, 0.0
          %545 = vadd.xlane.f32.xlu0 %v544
          %v546 = vpop.xlane.xlu0 %545
          %v547 = vrot.slane %v546, 4
          %v548 = vadd.f32 %v546, %v547
          %v549 = vrot.slane %v548, 2
          %v550 = vadd.f32 %v548, %v549
          %v551 = vrot.slane %v550, 1
          %v552 = vadd.f32 %v550, %v551
          %s553 = vtos %v552
          %v554 = vmul.f32 %v540, %v540
          %v555 = vsel %vm469, %v554, 0.0
          %556 = vadd.xlane.f32.xlu0 %v555
          %v557 = vpop.xlane.xlu0 %556
          %v558 = vrot.slane %v557, 4
          %v559 = vadd.f32 %v557, %v558
          %v560 = vrot.slane %v559, 2
          %v561 = vadd.f32 %v559, %v560
          %v562 = vrot.slane %v561, 1
          %v563 = vadd.f32 %v561, %v562
          %s564 = vtos %v563
          %s565 = smul.f32 %s553, 2.0
          %s566 = ssub.f32 %s564, %s565
          %s567 = sadd.f32 %s566, 8.0
          %s568 = smax.f32 %s567, 0.0
          %v569 = vstv %s568
          %v570 = vrsqrt.pop %v569
          %v571 = vmul.f32 %v569, %v570
          %vm572 = vcmp.eq.f32.partialorder %v569, inf
          %v573 = vsel %vm572, %v569, %v571
          %vm574 = vcmp.eq.f32.partialorder %v569, 0.0
          %v575 = vand.u32 %v569, 2147483648
          %v576 = vsel %vm574, %v575, %v573
          %s577 = vtos %v576
          %v578 = vstv %s553
          %v579 = vrsqrt.pop %v578
          %v580 = vmul.f32 %v578, %v579
          %vm581 = vcmp.eq.f32.partialorder %v578, inf
          %v582 = vsel %vm581, %v578, %v580
          %vm583 = vcmp.eq.f32.partialorder %v578, 0.0
          %v584 = vand.u32 %v578, 2147483648
          %v585 = vsel %vm583, %v584, %v582
          %s586 = vtos %v585
          %v587 = vlaneseq
          %v588 = vand.u32 %v587, 127
          %vm589 = vcmp.eq.s32.totalorder %v588, 0
          %vm590 = vcmp.eq.s32.totalorder %v588, 1
          %vm591 = vcmp.eq.s32.totalorder %v588, 2
          %vm592 = vcmp.eq.s32.totalorder %v588, 3
          %v593 = vstv %s586
          %v594 = vsel %vm592, %v593, 0.0
          %v595 = vstv %s577
          %v596 = vsel %vm591, %v595, %v594
          %v597 = vstv %s467
          %v598 = vsel %vm590, %v597, %v596
          %v599 = vstv %s448
          %v600 = vsel %vm589, %v599, %v598
          %601 = vst [vmem:[%s404] sm:$0x1] %v600
        $region68: #{tpu_custom_call.1} parent=39 // pred_fallthru
          _
        %s602 = sand.u32 %s186, 1
        %s603 = scalar_lea.sflag [#allocation6], %s602
        %s604 = sand.u32 %s186, 1
        %s605 = scalar_lea.vmem [#allocation13], %s604
        // Predicated region
        $region69: #{tpu_custom_call.1} parent=39 // pred_check
          %p606 = pneg %p196
        $region70: #{tpu_custom_call.1} parent=39 // pred_check_branch
          %608 = sbr.rel (%p606) target = $region72
        $region71: #{tpu_custom_call.1} parent=39 // pred_region
          %s610 = ssub.s32 16, 16
          %611 = vsyncadd %s603, %s610
          %s612 = smul.addr %s32, 16
          %s613 = scalar_lea.hbm %s5, %s612
          %s615 = sshll.u32 %s605, 4
          %s616 = int_to_ptr.vmem [resolvable:$true] %s615
          %618 = dma.vmem_to_hbm [thread:$0]  %s616, 16, %s613, %s603
        $region72: #{tpu_custom_call.1} parent=39 // pred_fallthru
          _
      $region40: #{tpu_custom_call.1} parent=5 // pred_fallthru
        _
      %p619 = scmp.le.s32.totalorder 2, %s23
      // Predicated region
      $region73: #{tpu_custom_call.1} parent=5 // pred_check
        %p620 = pneg %p619
      $region74: #{tpu_custom_call.1} parent=5 // pred_check_branch
        %622 = sbr.rel (%p620) target = $region76
      $region75: #{tpu_custom_call.1} parent=5 // pred_region
        %s623 = ssub.s32 %s23, 2
        // Predicated region
        $region77: #{tpu_custom_call.1} parent=75 // pred_check
          %p624 = pneg %p202
        $region78: #{tpu_custom_call.1} parent=75 // pred_check_branch
          %626 = sbr.rel (%p624) target = $region80
        $region79: #{tpu_custom_call.1} parent=75 // pred_region
          %s627 = sand.u32 %s187, 1
          %s628 = scalar_lea.sflag [#allocation6], %s627
          %s629 = sand.u32 %s187, 1
          %s630 = scalar_lea.vmem [#allocation13], %s629
          %631 = dma.done %s628, 16
        $region80: #{tpu_custom_call.1} parent=75 // pred_fallthru
          _
      $region76: #{tpu_custom_call.1} parent=5 // pred_fallthru
        _
    $region6: #{tpu_custom_call.1} parent=1 // loop_footer
      %s27 = sadd.s32 1, %s23
    $region7: #{tpu_custom_call.1} parent=1 // loop_footer_branch
      %22 = sbr.rel target = $region3
    $region8: #{tpu_custom_call.1} parent=1 // loop_exit
      _
    %632 = vsyncpa [#allocation5], 1
    %s633 = scalar_lea.sflag [#allocation5], 1
    %634 = vsyncpa %s633, 1
    %635 = vsyncpa [#allocation8], 1
    %s636 = scalar_lea.sflag [#allocation8], 1
    %637 = vsyncpa %s636, 1
    %638 = vsyncpa [#allocation11], 1
    %s639 = scalar_lea.sflag [#allocation11], 1
    %640 = vsyncpa %s639, 1
    %641 = vsyncpa [#allocation6], 1
    %s642 = scalar_lea.sflag [#allocation6], 1
    %643 = vsyncpa %s642, 1

</llo_original>
